<compile_context>
chip_gen: v6e
topology: v6e:2x2x1
jax: 0.10.0
libtpu: 0.0.40
codegen_flags: <defaults>
</compile_context>

<pallas_src>
import functools

import jax
import jax.numpy as jnp
from jax import lax
from jax.experimental import pallas as pl
from jax.experimental.pallas import tpu as pltpu


def _convlstm_kernel(patch_ref, w_ref, b_ref, c_ref, h_out_ref, c_out_ref,
                     *, hidden):
    """Fused conv (single MXU matmul) + LSTM gates for one lane-tile.

    patch_ref : (K, TN)      bf16  im2col patches, K = Cin*KH*KW, B*HW on lanes
    w_ref     : (Cout, K)    bf16  conv weight, Cout = 4*hidden (resident)
    b_ref     : (Cout, 1)    f32   conv bias (resident)
    c_ref     : (hidden, TN) f32   current cell state tile
    h_out_ref : (hidden, TN) f32   next hidden state tile
    c_out_ref : (hidden, TN) f32   next cell state tile
    """
    # One fused matmul over the whole conv contraction, f32 accumulation.
    acc = jnp.dot(w_ref[...], patch_ref[...],
                  preferred_element_type=jnp.float32)        # (Cout, TN)
    acc = acc + b_ref[...]                                   # + (Cout, 1)

    # Gate slices along sublanes (rows); hidden == 8 keeps them tile aligned.
    ifo = jax.nn.sigmoid(acc[0:3 * hidden, :])               # i, f, o together
    g = jnp.tanh(acc[3 * hidden:4 * hidden, :])

    i = ifo[0 * hidden:1 * hidden, :]
    f = ifo[1 * hidden:2 * hidden, :]
    o = ifo[2 * hidden:3 * hidden, :]

    c_next = f * c_ref[...] + i * g
    h_next = o * jnp.tanh(c_next)

    c_out_ref[...] = c_next
    h_out_ref[...] = h_next


def conv_lstm_cell_forward(x_nchw, h_nchw, c_nchw, weight, bias,
                           kernel_size, hidden_dim, tile_n=1024):
    """Matches ConvLSTMCell.forward(input_tensor, (h_cur, c_cur)).

    x_nchw : (B, input_dim, H, W)
    h_nchw : (B, hidden_dim, H, W)
    c_nchw : (B, hidden_dim, H, W)
    weight : (4*hidden_dim, input_dim+hidden_dim, KH, KW)   (PyTorch layout)
    bias   : (4*hidden_dim,)
    Returns (h_next, c_next) in NCHW.
    """
    KH, KW = kernel_size
    ph, pw = KH // 2, KW // 2
    B, in_dim, H, W = x_nchw.shape
    Cin = in_dim + hidden_dim
    Cout = 4 * hidden_dim
    K = Cin * KH * KW
    HW = H * W
    N = B * HW                                   # fused batch*spatial lane axis

    # Channels-first concat, then move channels in front of batch so that
    # (B, H, W) flattens into one contiguous lane axis.
    combined = jnp.concatenate([x_nchw, h_nchw], axis=1).astype(jnp.float32)
    combined = combined.transpose(1, 0, 2, 3)                 # (Cin, B, H, W)
    padded = jnp.pad(combined, ((0, 0), (0, 0), (ph, ph), (pw, pw)))

    # im2col: patches[cin*KH*KW + ki*KW + kj, b*HW + h*W + w]
    #         = padded[cin, b, h+ki, w+kj]
    taps = [padded[:, :, ki:ki + H, kj:kj + W]
            for ki in range(KH) for kj in range(KW)]          # (Cin, B, H, W) each
    patches = jnp.stack(taps, axis=1)                         # (Cin, KH*KW, B, H, W)
    patches = patches.reshape(K, N).astype(jnp.bfloat16)      # bf16 MXU operand

    # (Cout, Cin, KH, KW) -> (Cout, K); K order matches the patch K order.
    w_mat = weight.reshape(Cout, K).astype(jnp.bfloat16)
    b_col = bias.reshape(Cout, 1).astype(jnp.float32)
    c_flat = c_nchw.transpose(1, 0, 2, 3).reshape(hidden_dim, N)
    c_flat = c_flat.astype(jnp.float32)

    # Tile the lane axis; for the example N (=512) a single tile covers it.
    tn = tile_n if N % tile_n == 0 else N
    grid = (N // tn,)

    kernel = functools.partial(_convlstm_kernel, hidden=hidden_dim)

    h_flat, c_next_flat = pl.pallas_call(
        kernel,
        out_shape=(
            jax.ShapeDtypeStruct((hidden_dim, N), jnp.float32),
            jax.ShapeDtypeStruct((hidden_dim, N), jnp.float32),
        ),
        grid=grid,
        in_specs=[
            pl.BlockSpec((K, tn), lambda j: (0, j)),              # patches tile
            pl.BlockSpec((Cout, K), lambda j: (0, 0)),            # weight (resident)
            pl.BlockSpec((Cout, 1), lambda j: (0, 0)),            # bias   (resident)
            pl.BlockSpec((hidden_dim, tn), lambda j: (0, j)),     # c_cur tile
        ],
        out_specs=(
            pl.BlockSpec((hidden_dim, tn), lambda j: (0, j)),     # h_next tile
            pl.BlockSpec((hidden_dim, tn), lambda j: (0, j)),     # c_next tile
        ),
        compiler_params=pltpu.CompilerParams(
            dimension_semantics=("parallel",)),
    )(patches, w_mat, b_col, c_flat)

    h_next = h_flat.reshape(hidden_dim, B, H, W).transpose(1, 0, 2, 3)
    c_next = c_next_flat.reshape(hidden_dim, B, H, W).transpose(1, 0, 2, 3)
    return h_next, c_next


def _reference_forward(x, h, c, weight, bias, kernel_size, hidden_dim,
                       matmul_dtype=jnp.float32):
    """Pure-JAX reference matching the PyTorch module (NCHW)."""
    KH, KW = kernel_size
    ph, pw = KH // 2, KW // 2
    combined = jnp.concatenate([x, h], axis=1).astype(matmul_dtype)
    conv = lax.conv_general_dilated(
        combined, weight.astype(matmul_dtype), window_strides=(1, 1),
        padding=((ph, ph), (pw, pw)),
        dimension_numbers=("NCHW", "OIHW", "NCHW"),
        preferred_element_type=jnp.float32)
    conv = conv + bias.reshape(1, -1, 1, 1)
    cc_i, cc_f, cc_o, cc_g = jnp.split(conv, 4, axis=1)
    i = jax.nn.sigmoid(cc_i)
    f = jax.nn.sigmoid(cc_f)
    o = jax.nn.sigmoid(cc_o)
    g = jnp.tanh(cc_g)
    c_next = f * c + i * g
    h_next = o * jnp.tanh(c_next)
    return h_next, c_next


if __name__ == "__main__":
    # ConvLSTMCell(input_dim=4, hidden_dim=8, kernel_size=(3,3), num_features=4)
    B, input_dim, hidden_dim, H, W = 2, 4, 8, 16, 16
    kernel_size = (3, 3)
    num_features = 4  # i, f, o, g gates

    key = jax.random.PRNGKey(0)
    kx, kh, kc, kw, kb = jax.random.split(key, 5)
    x = jax.random.normal(kx, (B, input_dim, H, W), jnp.float32)
    h_cur = jax.random.normal(kh, (B, hidden_dim, H, W), jnp.float32)
    c_cur = jax.random.normal(kc, (B, hidden_dim, H, W), jnp.float32)

    Cin = input_dim + hidden_dim
    Cout = num_features * hidden_dim
    weight = 0.1 * jax.random.normal(kw, (Cout, Cin, *kernel_size), jnp.float32)
    bias = 0.1 * jax.random.normal(kb, (Cout,), jnp.float32)

    h_next, c_next = conv_lstm_cell_forward(
        x, h_cur, c_cur, weight, bias, kernel_size, hidden_dim)
    jax.block_until_ready((h_next, c_next))

    # Primary check: reference with matched (bf16) matmul operand precision.
    h_ref_bf, c_ref_bf = _reference_forward(
        x, h_cur, c_cur, weight, bias, kernel_size, hidden_dim,
        matmul_dtype=jnp.bfloat16)
    assert jnp.allclose(h_next, h_ref_bf, atol=2e-3, rtol=2e-3)
    assert jnp.allclose(c_next, c_ref_bf, atol=2e-3, rtol=2e-3)

    # Loose sanity check against the full-f32 reference (bf16 matmul inputs).
    h_ref, c_ref = _reference_forward(
        x, h_cur, c_cur, weight, bias, kernel_size, hidden_dim)
    assert jnp.allclose(h_next, h_ref, atol=1e-1, rtol=1e-1)
    assert jnp.allclose(c_next, c_ref, atol=1e-1, rtol=1e-1)

    print("KERNEL_OK")
</pallas_src>

<mosaic_0001>
module attributes {stable_mosaic.version = 11 : i64} {
  func.func @_convlstm_kernel(%arg0: i32, %arg1: memref<108x512xbf16, #tpu.memory_space<vmem>>, %arg2: memref<32x108xbf16, #tpu.memory_space<vmem>>, %arg3: memref<32x1xf32, #tpu.memory_space<vmem>>, %arg4: memref<8x512xf32, #tpu.memory_space<vmem>>, %arg5: memref<8x512xf32, #tpu.memory_space<vmem>>, %arg6: memref<8x512xf32, #tpu.memory_space<vmem>>) attributes {dimension_semantics = [#tpu.dimension_semantics<parallel>], iteration_bounds = array<i64: 1>, scalar_prefetch = 0 : i64, scratch_operands = 0 : i64, tpu.core_type = #tpu.core_type<tc>, window_params = [{transform_indices = @transform_0, window_bounds = array<i64: 108, 512>}, {pipeline_mode = #tpu.pipeline_mode<synchronous>, transform_indices = @transform_1, window_bounds = array<i64: 32, 108>}, {pipeline_mode = #tpu.pipeline_mode<synchronous>, transform_indices = @transform_2, window_bounds = array<i64: 32, 1>}, {transform_indices = @transform_3, window_bounds = array<i64: 8, 512>}, {transform_indices = @transform_4, window_bounds = array<i64: 8, 512>}, {transform_indices = @transform_5, window_bounds = array<i64: 8, 512>}]} {
    %c0 = arith.constant 0 : index
    %c0_0 = arith.constant 0 : index
    %0 = vector.load %arg2[%c0, %c0_0] : memref<32x108xbf16, #tpu.memory_space<vmem>>, vector<32x108xbf16>
    %c0_1 = arith.constant 0 : index
    %c0_2 = arith.constant 0 : index
    %1 = vector.load %arg1[%c0_1, %c0_2] : memref<108x512xbf16, #tpu.memory_space<vmem>>, vector<108x512xbf16>
    %cst = arith.constant dense<0.000000e+00> : vector<32x512xf32>
    %2 = tpu.matmul %0, %1, %cst {dimension_numbers = #tpu.dot_dimension_numbers<[1], [0], [0], [1], [0, 0, 1, 1], [], []>} : vector<32x108xbf16>, vector<108x512xbf16>, vector<32x512xf32> -> vector<32x512xf32>
    %c0_3 = arith.constant 0 : index
    %c0_4 = arith.constant 0 : index
    %3 = vector.load %arg3[%c0_3, %c0_4] : memref<32x1xf32, #tpu.memory_space<vmem>>, vector<32x1xf32>
    %4 = vector.broadcast %3 : vector<32x1xf32> to vector<32x512xf32>
    %5 = arith.addf %2, %4 : vector<32x512xf32>
    %6 = vector.extract_strided_slice %5 {offsets = [0, 0], sizes = [24, 512], strides = [1, 1]} : vector<32x512xf32> to vector<24x512xf32>
    %7 = arith.negf %6 : vector<24x512xf32>
    %8 = math.exp %7 : vector<24x512xf32>
    %cst_5 = arith.constant 1.000000e+00 : f32
    %9 = vector.broadcast %cst_5 : f32 to vector<24x512xf32>
    %10 = arith.addf %9, %8 : vector<24x512xf32>
    %11 = arith.divf %9, %10 : vector<24x512xf32>
    %12 = vector.extract_strided_slice %5 {offsets = [24, 0], sizes = [8, 512], strides = [1, 1]} : vector<32x512xf32> to vector<8x512xf32>
    %13 = math.tanh %12 : vector<8x512xf32>
    %14 = vector.extract_strided_slice %11 {offsets = [0, 0], sizes = [8, 512], strides = [1, 1]} : vector<24x512xf32> to vector<8x512xf32>
    %15 = vector.extract_strided_slice %11 {offsets = [8, 0], sizes = [8, 512], strides = [1, 1]} : vector<24x512xf32> to vector<8x512xf32>
    %16 = vector.extract_strided_slice %11 {offsets = [16, 0], sizes = [8, 512], strides = [1, 1]} : vector<24x512xf32> to vector<8x512xf32>
    %c0_6 = arith.constant 0 : index
    %c0_7 = arith.constant 0 : index
    %17 = vector.load %arg4[%c0_6, %c0_7] : memref<8x512xf32, #tpu.memory_space<vmem>>, vector<8x512xf32>
    %18 = arith.mulf %15, %17 : vector<8x512xf32>
    %19 = arith.mulf %14, %13 : vector<8x512xf32>
    %20 = arith.addf %18, %19 : vector<8x512xf32>
    %21 = math.tanh %20 : vector<8x512xf32>
    %22 = arith.mulf %16, %21 : vector<8x512xf32>
    %c0_8 = arith.constant 0 : index
    %c0_9 = arith.constant 0 : index
    %23 = vector.load %arg6[%c0_8, %c0_9] : memref<8x512xf32, #tpu.memory_space<vmem>>, vector<8x512xf32>
    tpu.vector_store %arg6[%c0_8, %c0_9], %20 {strides = array<i32>} : memref<8x512xf32, #tpu.memory_space<vmem>>, vector<8x512xf32>,
    %c0_10 = arith.constant 0 : index
    %c0_11 = arith.constant 0 : index
    %24 = vector.load %arg5[%c0_10, %c0_11] : memref<8x512xf32, #tpu.memory_space<vmem>>, vector<8x512xf32>
    tpu.vector_store %arg5[%c0_10, %c0_11], %22 {strides = array<i32>} : memref<8x512xf32, #tpu.memory_space<vmem>>, vector<8x512xf32>,
    return
  }
  func.func @transform_0(%arg0: i32) -> (i32, i32) {
    %c0_i32 = arith.constant 0 : i32
    %c0_i32_0 = arith.constant 0 : i32
    return %c0_i32, %arg0 : i32, i32
  }
  func.func @transform_1(%arg0: i32) -> (i32, i32) {
    %c0_i32 = arith.constant 0 : i32
    %c0_i32_0 = arith.constant 0 : i32
    %c0_i32_1 = arith.constant 0 : i32
    return %c0_i32, %c0_i32_0 : i32, i32
  }
  func.func @transform_2(%arg0: i32) -> (i32, i32) {
    %c0_i32 = arith.constant 0 : i32
    %c0_i32_0 = arith.constant 0 : i32
    %c0_i32_1 = arith.constant 0 : i32
    return %c0_i32, %c0_i32_0 : i32, i32
  }
  func.func @transform_3(%arg0: i32) -> (i32, i32) {
    %c0_i32 = arith.constant 0 : i32
    %c0_i32_0 = arith.constant 0 : i32
    return %c0_i32, %arg0 : i32, i32
  }
  func.func @transform_4(%arg0: i32) -> (i32, i32) {
    %c0_i32 = arith.constant 0 : i32
    %c0_i32_0 = arith.constant 0 : i32
    return %c0_i32, %arg0 : i32, i32
  }
  func.func @transform_5(%arg0: i32) -> (i32, i32) {
    %c0_i32 = arith.constant 0 : i32
    %c0_i32_0 = arith.constant 0 : i32
    return %c0_i32, %arg0 : i32, i32
  }
}

</mosaic_0001>

<llo_original>
// kernel: tpu_custom_call.1
$region0: #{tpu_custom_call.1}
  #allocation0 [shape = 'u32[]', space=smem, size = 0x4, offset = 0x4, fixed_abs, tag = 'smem constant byte address 0x4 - core index']
  #allocation1 [shape = 'u32[144,128]{1,0:T(1,128)}', space=vmem, size = 0x12000, scoped, tag = 'internal scratch']
  %s0 = inlined_call_operand.hbm [shape: bf16[108,512], index: 0, kind: input, shape index: {}]
  %s1 = inlined_call_operand.hbm [shape: bf16[32,108], index: 1, kind: input, shape index: {}]
  %s2 = inlined_call_operand.vmem [shape: f32[32,1], index: 2, kind: input, shape index: {}]
  %s3 = inlined_call_operand.vmem [shape: f32[8,512], index: 3, kind: input, shape index: {}]
  %s4 = inlined_call_operand.hbm [shape: f32[8,512], index: 4, kind: output, shape index: {0}]
  %s5 = inlined_call_operand.hbm [shape: f32[8,512], index: 5, kind: output, shape index: {1}]
  %6 = xla_tuple %s4, %s5
  %s7 = sld [smem:[#allocation0]]
  $region42: #{tpu_custom_call.1} parent=0
    _
  %s9 = ssub.s32 1, %s7
  %s10 = scalar_select 0, %s9, %s7
  $region1: #{tpu_custom_call.1} parent=0
    #allocation2 [shape = 'u8[114688]{0}', space=vmem, size = 0x1c000, scoped, tag = 'input window, operand 0, single buffered']
    #allocation3 [shape = 's32[1]{0}', space=sflag, size = 0x4, scoped, tag = 'scoped memory for tpu_custom_call.1']
    #allocation4 [shape = 's32[1]{0}', space=sflag, size = 0x4, scoped, tag = 'scoped memory for tpu_custom_call.1']
    #allocation5 [shape = 'u8[8192]{0}', space=vmem, size = 0x2000, scoped, tag = 'input window, operand 1, single buffered']
    #allocation6 [shape = 's32[1]{0}', space=sflag, size = 0x4, scoped, tag = 'scoped memory for tpu_custom_call.1']
    #allocation7 [shape = 'u8[16384]{0}', space=vmem, size = 0x4000, scoped, tag = 'output window, operand 0, single buffered']
    #allocation8 [shape = 'u8[16384]{0}', space=vmem, size = 0x4000, scoped, tag = 'output window, operand 1, single buffered']
    #allocation9 [shape = 's32[1]{0}', space=sflag, size = 0x4, scoped, tag = 'scoped memory for tpu_custom_call.1']
    %11 = vsyncpa [#allocation3], 0
    %12 = vsyncpa [#allocation6], 0
    %13 = vsyncpa [#allocation4], 0
    %14 = vsyncpa [#allocation9], 0
    // Predicated region
    $region2: #{tpu_custom_call.1} parent=1 // pred_check
      _
    $region3: #{tpu_custom_call.1} parent=1 // pred_check_branch
      %16 = sbr.rel (0) target = $region5
    $region4: #{tpu_custom_call.1} parent=1 // pred_region
      %s18 = ssub.s32 3584, 3584
      %19 = vsyncadd [#allocation3], %s18
      %s20 = sshll.u32 [#allocation2], 4
      %s21 = int_to_ptr.vmem [resolvable:$true] %s20
      %26 = dma.hbm_to_vmem [thread:$0]  %s0, 3584, %s21, [#allocation3], 256, 256, 16
    $region5: #{tpu_custom_call.1} parent=1 // pred_fallthru
      _
    // Predicated region
    $region6: #{tpu_custom_call.1} parent=1 // pred_check
      _
    $region7: #{tpu_custom_call.1} parent=1 // pred_check_branch
      %28 = sbr.rel (0) target = $region9
    $region8: #{tpu_custom_call.1} parent=1 // pred_region
      %s30 = ssub.s32 256, 256
      %31 = vsyncadd [#allocation6], %s30
      %s32 = sshll.u32 [#allocation5], 4
      %s33 = int_to_ptr.vmem [resolvable:$true] %s32
      %38 = dma.hbm_to_vmem [thread:$0]  %s1, 256, %s33, [#allocation6], 64, 64, 4
    $region9: #{tpu_custom_call.1} parent=1 // pred_fallthru
      _
    // Predicated region
    $region10: #{tpu_custom_call.1} parent=1 // pred_check
      _
    $region11: #{tpu_custom_call.1} parent=1 // pred_check_branch
      %40 = sbr.rel (0) target = $region13
    $region12: #{tpu_custom_call.1} parent=1 // pred_region
      _
    $region13: #{tpu_custom_call.1} parent=1 // pred_fallthru
      _
    // Predicated region
    $region14: #{tpu_custom_call.1} parent=1 // pred_check
      _
    $region15: #{tpu_custom_call.1} parent=1 // pred_check_branch
      %42 = sbr.rel (0) target = $region17
    $region16: #{tpu_custom_call.1} parent=1 // pred_region
      _
    $region17: #{tpu_custom_call.1} parent=1 // pred_fallthru
      _
    // Predicated region
    $region18: #{tpu_custom_call.1} parent=1 // pred_check
      _
    $region19: #{tpu_custom_call.1} parent=1 // pred_check_branch
      %44 = sbr.rel (0) target = $region21
    $region20: #{tpu_custom_call.1} parent=1 // pred_region
      %45 = dma.done [#allocation3], 3584
    $region21: #{tpu_custom_call.1} parent=1 // pred_fallthru
      _
    // Predicated region
    $region22: #{tpu_custom_call.1} parent=1 // pred_check
      _
    $region23: #{tpu_custom_call.1} parent=1 // pred_check_branch
      %47 = sbr.rel (0) target = $region25
    $region24: #{tpu_custom_call.1} parent=1 // pred_region
      %48 = dma.done [#allocation6], 256
    $region25: #{tpu_custom_call.1} parent=1 // pred_fallthru
      _
    %v50 = vld [vmem:[#allocation5] sm:$0xf]
    %v51 = vld [vmem:[#allocation5 + $0x4] sm:$0xf]
    %v52 = vld [vmem:[#allocation5 + $0x8] sm:$0xf]
    %v53 = vld [vmem:[#allocation5 + $0xc] sm:$0xf]
    %v54 = vld [vmem:[#allocation2] sm:$0xff]
    %v55 = vld [vmem:[#allocation2 + $0x8] sm:$0xff]
    %v56 = vld [vmem:[#allocation2 + $0x10] sm:$0xff]
    %v57 = vld [vmem:[#allocation2 + $0x18] sm:$0xff]
    %v58 = vld [vmem:[#allocation2 + $0x20] sm:$0xff]
    %v59 = vld [vmem:[#allocation2 + $0x28] sm:$0xff]
    %v60 = vld [vmem:[#allocation2 + $0x30] sm:$0xff]
    %v61 = vld [vmem:[#allocation2 + $0x38] sm:$0xff]
    %v62 = vld [vmem:[#allocation2 + $0x40] sm:$0xff]
    %v63 = vld [vmem:[#allocation2 + $0x48] sm:$0xff]
    %v64 = vld [vmem:[#allocation2 + $0x50] sm:$0xff]
    %v65 = vld [vmem:[#allocation2 + $0x58] sm:$0xff]
    %v66 = vld [vmem:[#allocation2 + $0x60] sm:$0xff]
    %v67 = vld [vmem:[#allocation2 + $0x68] sm:$0xff]
    %v68 = vld [vmem:[#allocation2 + $0x70] sm:$0xff]
    %v69 = vld [vmem:[#allocation2 + $0x78] sm:$0xff]
    %v70 = vld [vmem:[#allocation2 + $0x80] sm:$0xff]
    %v71 = vld [vmem:[#allocation2 + $0x88] sm:$0xff]
    %v72 = vld [vmem:[#allocation2 + $0x90] sm:$0xff]
    %v73 = vld [vmem:[#allocation2 + $0x98] sm:$0xff]
    %v74 = vld [vmem:[#allocation2 + $0xa0] sm:$0xff]
    %v75 = vld [vmem:[#allocation2 + $0xa8] sm:$0xff]
    %v76 = vld [vmem:[#allocation2 + $0xb0] sm:$0xff]
    %v77 = vld [vmem:[#allocation2 + $0xb8] sm:$0xff]
    %v78 = vld [vmem:[#allocation2 + $0xc0] sm:$0xff]
    %v79 = vld [vmem:[#allocation2 + $0xc8] sm:$0xff]
    %v80 = vld [vmem:[#allocation2 + $0xd0] sm:$0x33]
    %v81 = vld [vmem:[#allocation2 + $0xd8] sm:$0x33]
    %v82 = vld [vmem:[%s2] sm:$0xff]
    %v83 = vld [vmem:[%s2 + $0x8] sm:$0xff]
    %v84 = vld [vmem:[%s2 + $0x10] sm:$0xff]
    %v85 = vld [vmem:[%s2 + $0x18] sm:$0xff]
    %87 = vset.pattern.permute.xlu0 0
    %88 = vperm.xlu0 %87, %v82
    %v89 = vpop.permute.xlu0 %88
    %92 = vset.pattern.permute.xlu0 0
    %93 = vperm.xlu0 %92, %v83
    %v94 = vpop.permute.xlu0 %93
    %97 = vset.pattern.permute.xlu0 0
    %98 = vperm.xlu0 %97, %v84
    %v99 = vpop.permute.xlu0 %98
    %102 = vset.pattern.permute.xlu0 0
    %103 = vperm.xlu0 %102, %v85
    %v104 = vpop.permute.xlu0 %103
    %v110 = vunpack.c.l.b16 %v50
    %v111 = vunpack.c.l.b16 %v51
    %v112 = vunpack.c.l.b16 %v52
    %v113 = vunpack.c.l.b16 %v53
    %v114 = vpack.c.b16 %v111, %v110
    %v115 = vpack.c.b16 %v113, %v112
    %v144 = vunpack.c.l.b16 %v54
    %v145 = vunpack.c.h.b16 %v54
    %v146 = vunpack.c.l.b16 %v55
    %v147 = vunpack.c.h.b16 %v55
    %v148 = vunpack.c.l.b16 %v56
    %v149 = vunpack.c.h.b16 %v56
    %v150 = vunpack.c.l.b16 %v57
    %v151 = vunpack.c.h.b16 %v57
    %v152 = vunpack.c.l.b16 %v58
    %v153 = vunpack.c.h.b16 %v58
    %v154 = vunpack.c.l.b16 %v59
    %v155 = vunpack.c.h.b16 %v59
    %v156 = vunpack.c.l.b16 %v60
    %v157 = vunpack.c.h.b16 %v60
    %v158 = vunpack.c.l.b16 %v61
    %v159 = vunpack.c.h.b16 %v61
    %v160 = vunpack.c.l.b16 %v62
    %v161 = vunpack.c.h.b16 %v62
    %v162 = vunpack.c.l.b16 %v63
    %v163 = vunpack.c.h.b16 %v63
    %v164 = vunpack.c.l.b16 %v64
    %v165 = vunpack.c.h.b16 %v64
    %v166 = vunpack.c.l.b16 %v65
    %v167 = vunpack.c.h.b16 %v65
    %v168 = vunpack.c.l.b16 %v66
    %v169 = vunpack.c.h.b16 %v66
    %v170 = vunpack.c.l.b16 %v67
    %v171 = vunpack.c.h.b16 %v67
    %v172 = vunpack.c.l.b16 %v68
    %v173 = vunpack.c.h.b16 %v68
    %v174 = vunpack.c.l.b16 %v69
    %v175 = vunpack.c.h.b16 %v69
    %v176 = vunpack.c.l.b16 %v70
    %v177 = vunpack.c.h.b16 %v70
    %v178 = vunpack.c.l.b16 %v71
    %v179 = vunpack.c.h.b16 %v71
    %v180 = vunpack.c.l.b16 %v72
    %v181 = vunpack.c.h.b16 %v72
    %v182 = vunpack.c.l.b16 %v73
    %v183 = vunpack.c.h.b16 %v73
    %v184 = vunpack.c.l.b16 %v74
    %v185 = vunpack.c.h.b16 %v74
    %v186 = vunpack.c.l.b16 %v75
    %v187 = vunpack.c.h.b16 %v75
    %v188 = vunpack.c.l.b16 %v76
    %v189 = vunpack.c.h.b16 %v76
    %v190 = vunpack.c.l.b16 %v77
    %v191 = vunpack.c.h.b16 %v77
    %v192 = vunpack.c.l.b16 %v78
    %v193 = vunpack.c.h.b16 %v78
    %v194 = vunpack.c.l.b16 %v79
    %v195 = vunpack.c.h.b16 %v79
    %v196 = vunpack.c.l.b16 %v80
    %v197 = vunpack.c.h.b16 %v80
    %v198 = vunpack.c.l.b16 %v81
    %v199 = vunpack.c.h.b16 %v81
    %v200 = vpack.c.b16 %v148, %v144
    %v201 = vpack.c.b16 %v149, %v145
    %v202 = vpack.c.b16 %v150, %v146
    %v203 = vpack.c.b16 %v151, %v147
    %v204 = vpack.c.b16 %v156, %v152
    %v205 = vpack.c.b16 %v157, %v153
    %v206 = vpack.c.b16 %v158, %v154
    %v207 = vpack.c.b16 %v159, %v155
    %v208 = vpack.c.b16 %v164, %v160
    %v209 = vpack.c.b16 %v165, %v161
    %v210 = vpack.c.b16 %v166, %v162
    %v211 = vpack.c.b16 %v167, %v163
    %v212 = vpack.c.b16 %v172, %v168
    %v213 = vpack.c.b16 %v173, %v169
    %v214 = vpack.c.b16 %v174, %v170
    %v215 = vpack.c.b16 %v175, %v171
    %v216 = vpack.c.b16 %v180, %v176
    %v217 = vpack.c.b16 %v181, %v177
    %v218 = vpack.c.b16 %v182, %v178
    %v219 = vpack.c.b16 %v183, %v179
    %v220 = vpack.c.b16 %v188, %v184
    %v221 = vpack.c.b16 %v189, %v185
    %v222 = vpack.c.b16 %v190, %v186
    %v223 = vpack.c.b16 %v191, %v187
    %v224 = vpack.c.b16 %v196, %v192
    %v225 = vpack.c.b16 %v197, %v193
    %v226 = vpack.c.b16 %v198, %v194
    %v227 = vpack.c.b16 %v199, %v195
    %vm252 = vcmask 883712
    %v254 = vsel %vm252, %v114, 0
    %v257 = vsel %vm252, %v115, 0
    %vm259 = vcmask 1045504
    %v261 = vsel %vm259, %v224, 0
    %v264 = vsel %vm259, %v225, 0
    %v267 = vsel %vm259, %v226, 0
    %v270 = vsel %vm259, %v227, 0
    %272 = vmatprep.subr.bf16.mxu0 0
    %273 = vmatpush1.bf16.msra.mxu0 0
    %274 = vmatprep.subr.bf16.mxu0 %v264
    %275 = vmatpush1.bf16.msra.mxu0 %v261
    %276 = vmatprep.subr.bf16.mxu0 %v221
    %277 = vmatpush1.bf16.msra.mxu0 %v220
    %278 = vmatprep.subr.bf16.mxu0 %v217
    %279 = vmatpush1.bf16.msra.mxu0 %v216
    %280 = vmatprep.subr.bf16.mxu0 %v213
    %281 = vmatpush1.bf16.msra.mxu0 %v212
    %282 = vmatprep.subr.bf16.mxu0 %v209
    %283 = vmatpush1.bf16.msra.mxu0 %v208
    %284 = vmatprep.subr.bf16.mxu0 %v205
    %285 = vmatpush1.bf16.msra.mxu0 %v204
    %286 = vmatprep.subr.bf16.mxu0 %v201
    %287 = vmatpush1.bf16.msra.mxu0 %v200
    %288 = vmatprep.subr.bf16.mxu0 0
    %289 = vmatpush2.bf16.msra.mxu0 0
    %290 = vmatprep.subr.bf16.mxu0 0
    %291 = vmatpush2.bf16.msra.mxu0 0
    %292 = vmatprep.subr.bf16.mxu0 0
    %293 = vmatpush2.bf16.msra.mxu0 0
    %294 = vmatprep.subr.bf16.mxu0 0
    %295 = vmatpush2.bf16.msra.mxu0 0
    %296 = vmatprep.subr.bf16.mxu0 0
    %297 = vmatpush2.bf16.msra.mxu0 0
    %298 = vmatprep.subr.bf16.mxu0 0
    %299 = vmatpush2.bf16.msra.mxu0 0
    %300 = vmatprep.subr.bf16.mxu0 0
    %301 = vmatpush2.bf16.msra.mxu0 0
    %302 = vmatprep.subr.bf16.mxu0 0
    %303 = vmatpush2.bf16.msra.mxu0 0
    %304 = vmatprep.mubr.bf16.mxu0 0
    %305 = vmatmul.mubr.bf16.gmra.mxu0 %v254
    %v306 = vpop.f32.mrf.mxu0
    %v307 = vadd.f32 %v89, %v306
    %v308 = vpop.f32.mrf.mxu0
    %v309 = vadd.f32 %v89, %v308
    %v310 = vpop.f32.mrf.mxu0
    %v311 = vadd.f32 %v94, %v310
    %v312 = vpop.f32.mrf.mxu0
    %v313 = vadd.f32 %v94, %v312
    %314 = vmatprep.mubr.bf16.mxu0 0
    %315 = vmatmul.mubr.bf16.gmra.mxu0 %v257
    %v316 = vpop.f32.mrf.mxu0
    %v317 = vadd.f32 %v99, %v316
    %v318 = vpop.f32.mrf.mxu0
    %v319 = vadd.f32 %v99, %v318
    %v320 = vpop.f32.mrf.mxu0
    %v321 = vadd.f32 %v104, %v320
    %v322 = vpop.f32.mrf.mxu0
    %v323 = vadd.f32 %v104, %v322
    %324 = vdwg.mxu0
    %325 = vmatprep.subr.bf16.mxu0 0
    %326 = vmatpush1.bf16.msra.mxu0 0
    %327 = vmatprep.subr.bf16.mxu0 %v270
    %328 = vmatpush1.bf16.msra.mxu0 %v267
    %329 = vmatprep.subr.bf16.mxu0 %v223
    %330 = vmatpush1.bf16.msra.mxu0 %v222
    %331 = vmatprep.subr.bf16.mxu0 %v219
    %332 = vmatpush1.bf16.msra.mxu0 %v218
    %333 = vmatprep.subr.bf16.mxu0 %v215
    %334 = vmatpush1.bf16.msra.mxu0 %v214
    %335 = vmatprep.subr.bf16.mxu0 %v211
    %336 = vmatpush1.bf16.msra.mxu0 %v210
    %337 = vmatprep.subr.bf16.mxu0 %v207
    %338 = vmatpush1.bf16.msra.mxu0 %v206
    %339 = vmatprep.subr.bf16.mxu0 %v203
    %340 = vmatpush1.bf16.msra.mxu0 %v202
    %341 = vmatprep.subr.bf16.mxu0 0
    %342 = vmatpush2.bf16.msra.mxu0 0
    %343 = vmatprep.subr.bf16.mxu0 0
    %344 = vmatpush2.bf16.msra.mxu0 0
    %345 = vmatprep.subr.bf16.mxu0 0
    %346 = vmatpush2.bf16.msra.mxu0 0
    %347 = vmatprep.subr.bf16.mxu0 0
    %348 = vmatpush2.bf16.msra.mxu0 0
    %349 = vmatprep.subr.bf16.mxu0 0
    %350 = vmatpush2.bf16.msra.mxu0 0
    %351 = vmatprep.subr.bf16.mxu0 0
    %352 = vmatpush2.bf16.msra.mxu0 0
    %353 = vmatprep.subr.bf16.mxu0 0
    %354 = vmatpush2.bf16.msra.mxu0 0
    %355 = vmatprep.subr.bf16.mxu0 0
    %356 = vmatpush2.bf16.msra.mxu0 0
    %357 = vmatprep.mubr.bf16.mxu0 0
    %358 = vmatmul.mubr.bf16.gmra.mxu0 %v254
    %v359 = vpop.f32.mrf.mxu0
    %v360 = vadd.f32 %v89, %v359
    %v361 = vpop.f32.mrf.mxu0
    %v362 = vadd.f32 %v89, %v361
    %v363 = vpop.f32.mrf.mxu0
    %v364 = vadd.f32 %v94, %v363
    %v365 = vpop.f32.mrf.mxu0
    %v366 = vadd.f32 %v94, %v365
    %367 = vmatprep.mubr.bf16.mxu0 0
    %368 = vmatmul.mubr.bf16.gmra.mxu0 %v257
    %v369 = vpop.f32.mrf.mxu0
    %v370 = vadd.f32 %v99, %v369
    %v371 = vpop.f32.mrf.mxu0
    %v372 = vadd.f32 %v99, %v371
    %v373 = vpop.f32.mrf.mxu0
    %v374 = vadd.f32 %v104, %v373
    %v375 = vpop.f32.mrf.mxu0
    %v376 = vadd.f32 %v104, %v375
    %377 = vdwg.mxu0
    %v378 = vxor.u32 %v307, 2147483648
    %v379 = vxor.u32 %v309, 2147483648
    %v380 = vxor.u32 %v360, 2147483648
    %v381 = vxor.u32 %v362, 2147483648
    %v382 = vxor.u32 %v311, 2147483648
    %v383 = vxor.u32 %v313, 2147483648
    %v384 = vxor.u32 %v364, 2147483648
    %v385 = vxor.u32 %v366, 2147483648
    %v386 = vxor.u32 %v317, 2147483648
    %v387 = vxor.u32 %v319, 2147483648
    %v388 = vxor.u32 %v370, 2147483648
    %v389 = vxor.u32 %v372, 2147483648
    %v390 = vmul.f32 %v378, 1.442695
    %v391 = vpow.pop %v390
    %v392 = vmul.f32 %v379, 1.442695
    %v393 = vpow.pop %v392
    %v394 = vmul.f32 %v380, 1.442695
    %v395 = vpow.pop %v394
    %v396 = vmul.f32 %v381, 1.442695
    %v397 = vpow.pop %v396
    %v398 = vmul.f32 %v382, 1.442695
    %v399 = vpow.pop %v398
    %v400 = vmul.f32 %v383, 1.442695
    %v401 = vpow.pop %v400
    %v402 = vmul.f32 %v384, 1.442695
    %v403 = vpow.pop %v402
    %v404 = vmul.f32 %v385, 1.442695
    %v405 = vpow.pop %v404
    %v406 = vmul.f32 %v386, 1.442695
    %v407 = vpow.pop %v406
    %v408 = vmul.f32 %v387, 1.442695
    %v409 = vpow.pop %v408
    %v410 = vmul.f32 %v388, 1.442695
    %v411 = vpow.pop %v410
    %v412 = vmul.f32 %v389, 1.442695
    %v413 = vpow.pop %v412
    %v414 = vadd.f32 %v391, 1.0
    %v415 = vadd.f32 %v393, 1.0
    %v416 = vadd.f32 %v395, 1.0
    %v417 = vadd.f32 %v397, 1.0
    %v418 = vadd.f32 %v399, 1.0
    %v419 = vadd.f32 %v401, 1.0
    %v420 = vadd.f32 %v403, 1.0
    %v421 = vadd.f32 %v405, 1.0
    %v422 = vadd.f32 %v407, 1.0
    %v423 = vadd.f32 %v409, 1.0
    %v424 = vadd.f32 %v411, 1.0
    %v425 = vadd.f32 %v413, 1.0
    %v426 = vrcp.pop %v414
    %v427 = vmul.f32 1.0, %v426
    %v428 = vrcp.pop %v415
    %v429 = vmul.f32 1.0, %v428
    %v430 = vrcp.pop %v416
    %v431 = vmul.f32 1.0, %v430
    %v432 = vrcp.pop %v417
    %v433 = vmul.f32 1.0, %v432
    %v434 = vrcp.pop %v418
    %v435 = vmul.f32 1.0, %v434
    %v436 = vrcp.pop %v419
    %v437 = vmul.f32 1.0, %v436
    %v438 = vrcp.pop %v420
    %v439 = vmul.f32 1.0, %v438
    %v440 = vrcp.pop %v421
    %v441 = vmul.f32 1.0, %v440
    %v442 = vrcp.pop %v422
    %v443 = vmul.f32 1.0, %v442
    %v444 = vrcp.pop %v423
    %v445 = vmul.f32 1.0, %v444
    %v446 = vrcp.pop %v424
    %v447 = vmul.f32 1.0, %v446
    %v448 = vrcp.pop %v425
    %v449 = vmul.f32 1.0, %v448
    %v450 = vtanh.pop %v321
    %v451 = vtanh.pop %v323
    %v452 = vtanh.pop %v374
    %v453 = vtanh.pop %v376
    %v454 = vld [vmem:[%s3] sm:$0xff]
    %v455 = vld [vmem:[%s3 + $0x8] sm:$0xff]
    %v456 = vld [vmem:[%s3 + $0x10] sm:$0xff]
    %v457 = vld [vmem:[%s3 + $0x18] sm:$0xff]
    %v458 = vmul.f32 %v435, %v454
    %v459 = vmul.f32 %v437, %v455
    %v460 = vmul.f32 %v439, %v456
    %v461 = vmul.f32 %v441, %v457
    %v462 = vmul.f32 %v427, %v450
    %v463 = vmul.f32 %v429, %v451
    %v464 = vmul.f32 %v431, %v452
    %v465 = vmul.f32 %v433, %v453
    %v466 = vadd.f32 %v458, %v462
    %v467 = vadd.f32 %v459, %v463
    %v468 = vadd.f32 %v460, %v464
    %v469 = vadd.f32 %v461, %v465
    %v470 = vtanh.pop %v466
    %v471 = vtanh.pop %v467
    %v472 = vtanh.pop %v468
    %v473 = vtanh.pop %v469
    %v474 = vmul.f32 %v443, %v470
    %v475 = vmul.f32 %v445, %v471
    %v476 = vmul.f32 %v447, %v472
    %v477 = vmul.f32 %v449, %v473
    %478 = vst [vmem:[#allocation8] sm:$0xff] %v466
    %479 = vst [vmem:[#allocation8 + $0x8] sm:$0xff] %v467
    %480 = vst [vmem:[#allocation8 + $0x10] sm:$0xff] %v468
    %481 = vst [vmem:[#allocation8 + $0x18] sm:$0xff] %v469
    %482 = vst [vmem:[#allocation7] sm:$0xff] %v474
    %483 = vst [vmem:[#allocation7 + $0x8] sm:$0xff] %v475
    %484 = vst [vmem:[#allocation7 + $0x10] sm:$0xff] %v476
    %485 = vst [vmem:[#allocation7 + $0x18] sm:$0xff] %v477
    // Predicated region
    $region26: #{tpu_custom_call.1} parent=1 // pred_check
      _
    $region27: #{tpu_custom_call.1} parent=1 // pred_check_branch
      %487 = sbr.rel (0) target = $region29
    $region28: #{tpu_custom_call.1} parent=1 // pred_region
      %s489 = ssub.s32 512, 512
      %490 = vsyncadd [#allocation4], %s489
      %s492 = sshll.u32 [#allocation7], 4
      %s493 = int_to_ptr.vmem [resolvable:$true] %s492
      %495 = dma.vmem_to_hbm [thread:$0]  %s493, 512, %s4, [#allocation4]
    $region29: #{tpu_custom_call.1} parent=1 // pred_fallthru
      _
    // Predicated region
    $region30: #{tpu_custom_call.1} parent=1 // pred_check
      _
    $region31: #{tpu_custom_call.1} parent=1 // pred_check_branch
      %497 = sbr.rel (0) target = $region33
    $region32: #{tpu_custom_call.1} parent=1 // pred_region
      %s499 = ssub.s32 512, 512
      %500 = vsyncadd [#allocation9], %s499
      %s502 = sshll.u32 [#allocation8], 4
      %s503 = int_to_ptr.vmem [resolvable:$true] %s502
      %505 = dma.vmem_to_hbm [thread:$0]  %s503, 512, %s5, [#allocation9]
    $region33: #{tpu_custom_call.1} parent=1 // pred_fallthru
      _
    // Predicated region
    $region34: #{tpu_custom_call.1} parent=1 // pred_check
      _
    $region35: #{tpu_custom_call.1} parent=1 // pred_check_branch
      %507 = sbr.rel (0) target = $region37
    $region36: #{tpu_custom_call.1} parent=1 // pred_region
      %508 = dma.done [#allocation4], 512
    $region37: #{tpu_custom_call.1} parent=1 // pred_fallthru
      _
    // Predicated region
    $region38: #{tpu_custom_call.1} parent=1 // pred_check
      _
    $region39: #{tpu_custom_call.1} parent=1 // pred_check_branch
      %510 = sbr.rel (0) target = $region41
    $region40: #{tpu_custom_call.1} parent=1 // pred_region
      %511 = dma.done [#allocation9], 512
    $region41: #{tpu_custom_call.1} parent=1 // pred_fallthru
      _
    %512 = vsyncpa [#allocation3], 1
    %513 = vsyncpa [#allocation6], 1
    %514 = vsyncpa [#allocation4], 1
    %515 = vsyncpa [#allocation9], 1

</llo_original>
